<compile_context>
chip_gen: v7x
topology: tpu7x:2x2x1
jax: 0.10.0
libtpu: 0.0.40
codegen_flags: <defaults>
</compile_context>

<pallas_src>
import functools

import jax
import jax.numpy as jnp
from jax.experimental import pallas as pl
from jax.experimental.pallas import tpu as pltpu


def _gem_pow_kernel(params_ref, x_ref, o_ref, *, eps, inv_l):
    # Generic path: per-element x**p via exp(p*log(x)) on the EUP.
    # params_ref : SMEM (2,) = [p, 1/p]
    # x_ref      : (TR, L) tile -- rows = channel entries, lanes = spatial.
    # o_ref      : (TR, 1) output tile.
    p = params_ref[0]
    inv_p = params_ref[1]
    x = x_ref[...].astype(jnp.float32)
    xc = jnp.maximum(x, eps)                      # clamp(min=eps) > 0
    xp = jnp.exp(p * jnp.log(xc))                 # x**p
    mean = jnp.sum(xp, axis=-1, keepdims=True) * inv_l   # (TR, 1) avg pool
    out = jnp.exp(jnp.log(mean) * inv_p)          # mean**(1/p); mean >= eps**p > 0
    o_ref[...] = out.astype(o_ref.dtype)


def _gem_intpow_kernel(params_ref, x_ref, o_ref, *, eps, inv_l, p_int):
    # Fast path for integer p: per-element power via VPU multiplies
    # (exponentiation by squaring, unrolled at trace time). Only the final
    # pow(1/p) on the (TR, 1) mean touches the EUP.
    inv_p = params_ref[1]
    x = x_ref[...].astype(jnp.float32)
    xc = jnp.maximum(x, eps)
    acc = None
    base = xc
    e = p_int
    while e > 0:
        if e & 1:
            acc = base if acc is None else acc * base
        e >>= 1
        if e:
            base = base * base
    mean = jnp.sum(acc, axis=-1, keepdims=True) * inv_l
    out = jnp.exp(jnp.log(mean) * inv_p)
    o_ref[...] = out.astype(o_ref.dtype)


def _round_up(a, b):
    return (a + b - 1) // b * b


def _cdiv(a, b):
    return (a + b - 1) // b


def gem_pallas(x, p, eps=1e-6):
    """GeM pooling. x: (N, C, H, W) float array. p: (1,) float parameter."""
    N, C, H, W = x.shape
    L = H * W
    NC = N * C
    itemsize = jnp.dtype(x.dtype).itemsize

    # Natural layout: H*W is already contiguous in NCHW, so this reshape is
    # free (no transpose, no pad, no extra HBM pass).
    x2 = x.reshape(NC, L)

    SUB = 8
    row_bytes = L * itemsize
    max_tile_bytes = 8 * 1024 * 1024  # per input buffer (double-buffered)
    tr_cap = max(SUB, (max_tile_bytes // max(row_bytes, 1)) // SUB * SUB)

    if NC <= 2 * SUB:
        # Tiny problem: one full-extent block (TR need not be 8-aligned when
        # it spans the whole row axis).
        TR = NC
    else:
        # Aim for >=2 grid steps (v7x megacore) while keeping tiles large.
        TR = max(SUB, min(tr_cap, _round_up(_cdiv(NC, 2), SUB)))
    grid = (_cdiv(NC, TR),)

    # Scalar params in SMEM: [p, 1/p] (inv_p precomputed -> the finalize is a
    # multiply, not a vector divide).
    pf = p.astype(jnp.float32).reshape(-1)[:1]
    params = jnp.concatenate([pf, 1.0 / pf])

    # Static integer-p fast path when p is a concrete host value (not traced).
    p_static = None
    try:
        p_static = float(jax.device_get(p).reshape(-1)[0])
    except Exception:
        p_static = None

    if (p_static is not None
            and abs(p_static - round(p_static)) < 1e-12
            and 1 <= round(p_static) <= 16):
        kernel = functools.partial(
            _gem_intpow_kernel, eps=float(eps), inv_l=1.0 / L,
            p_int=int(round(p_static)))
        transcendentals = 2 * NC                       # only the finalize
    else:
        kernel = functools.partial(
            _gem_pow_kernel, eps=float(eps), inv_l=1.0 / L)
        transcendentals = 2 * NC * L + 2 * NC

    out = pl.pallas_call(
        kernel,
        out_shape=jax.ShapeDtypeStruct((NC, 1), x.dtype),
        grid=grid,
        in_specs=[
            pl.BlockSpec(memory_space=pltpu.SMEM),      # [p, 1/p] scalars
            pl.BlockSpec((TR, L), lambda i: (i, 0)),    # activations tile
        ],
        out_specs=pl.BlockSpec((TR, 1), lambda i: (i, 0)),
        compiler_params=pltpu.CompilerParams(
            dimension_semantics=("parallel",),
            vmem_limit_bytes=32 * 1024 * 1024),
        cost_estimate=pl.CostEstimate(
            flops=4 * NC * L,
            transcendentals=transcendentals,
            bytes_accessed=NC * L * itemsize + NC * itemsize),
    )(params, x2)

    return out.reshape(N, C, 1, 1)


def gem_reference(x, p, eps=1e-6):
    """Pure-JAX reference mirroring the PyTorch forward."""
    xc = jnp.maximum(x, eps)
    xp = xc ** p[0]
    pooled = jnp.mean(xp, axis=(-2, -1), keepdims=True)
    return pooled ** (1.0 / p[0])


def _check(x, p_param, eps=1e-6):
    y = gem_pallas(x, p_param, eps=eps)
    jax.block_until_ready(y)
    y_ref = gem_reference(x, p_param, eps=eps)
    assert y.shape == (x.shape[0], x.shape[1], 1, 1), y.shape
    assert jnp.allclose(y, y_ref, atol=1e-5, rtol=1e-4), (
        float(jnp.max(jnp.abs(y - y_ref))))


if __name__ == "__main__":
    key = jax.random.PRNGKey(0)

    # Primary test (module defaults): p initialized to 3 -> integer fast path.
    N, C, H, W = 2, 4, 16, 16
    x = jax.random.normal(key, (N, C, H, W), dtype=jnp.float32)
    p_param = jnp.ones((1,), dtype=jnp.float32) * 3.0
    _check(x, p_param)

    # Non-integer p -> generic exp/log path.
    p_frac = jnp.ones((1,), dtype=jnp.float32) * 2.5
    _check(x, p_frac)

    # Larger channel count -> multi-step grid with a partial last block.
    k2 = jax.random.PRNGKey(1)
    x2 = jax.random.normal(k2, (2, 12, 16, 16), dtype=jnp.float32)
    _check(x2, p_param)

    print("KERNEL_OK")
</pallas_src>

<mosaic_0001>
module attributes {stable_mosaic.version = 11 : i64} {
  func.func @_gem_intpow_kernel(%arg0: i32, %arg1: memref<2xf32, #tpu.memory_space<smem>>, %arg2: memref<8x256xf32, #tpu.memory_space<vmem>>, %arg3: memref<8x1xf32, #tpu.memory_space<vmem>>) attributes {dimension_semantics = [#tpu.dimension_semantics<parallel>], iteration_bounds = array<i64: 1>, scalar_prefetch = 0 : i64, scratch_operands = 0 : i64, tpu.core_type = #tpu.core_type<tc>, window_params = [{transform_indices = @transform_0, window_bounds = array<i64: 2>}, {transform_indices = @transform_1, window_bounds = array<i64: 8, 256>}, {transform_indices = @transform_2, window_bounds = array<i64: 8, 1>}]} {
    %c1 = arith.constant 1 : index
    %0 = memref.load %arg1[%c1] : memref<2xf32, #tpu.memory_space<smem>>
    %c0 = arith.constant 0 : index
    %c0_0 = arith.constant 0 : index
    %1 = vector.load %arg2[%c0, %c0_0] : memref<8x256xf32, #tpu.memory_space<vmem>>, vector<8x256xf32>
    %cst = arith.constant 9.99999997E-7 : f32
    %2 = vector.broadcast %cst : f32 to vector<8x256xf32>
    %3 = arith.maximumf %1, %2 : vector<8x256xf32>
    %4 = arith.mulf %3, %3 : vector<8x256xf32>
    %5 = arith.mulf %3, %4 : vector<8x256xf32>
    %cst_1 = arith.constant dense<0.000000e+00> : vector<8xf32>
    %6 = vector.multi_reduction <add>, %5, %cst_1 [1] : vector<8x256xf32> to vector<8xf32>
    %7 = vector.shape_cast %6 : vector<8xf32> to vector<8x1xf32>
    %cst_2 = arith.constant 3.906250e-03 : f32
    %8 = vector.broadcast %cst_2 : f32 to vector<8x1xf32>
    %9 = arith.mulf %7, %8 : vector<8x1xf32>
    %10 = math.log %9 : vector<8x1xf32>
    %11 = vector.broadcast %0 : f32 to vector<8x1xf32>
    %12 = arith.mulf %10, %11 : vector<8x1xf32>
    %13 = math.exp %12 : vector<8x1xf32>
    %c0_3 = arith.constant 0 : index
    %c0_4 = arith.constant 0 : index
    %14 = vector.load %arg3[%c0_3, %c0_4] : memref<8x1xf32, #tpu.memory_space<vmem>>, vector<8x1xf32>
    tpu.vector_store %arg3[%c0_3, %c0_4], %13 {strides = array<i32>} : memref<8x1xf32, #tpu.memory_space<vmem>>, vector<8x1xf32>,
    return
  }
  func.func @transform_0(%arg0: i32) -> i32 {
    %c0_i32 = arith.constant 0 : i32
    %c0_i32_0 = arith.constant 0 : i32
    return %c0_i32 : i32
  }
  func.func @transform_1(%arg0: i32) -> (i32, i32) {
    %c0_i32 = arith.constant 0 : i32
    %c0_i32_0 = arith.constant 0 : i32
    return %arg0, %c0_i32 : i32, i32
  }
  func.func @transform_2(%arg0: i32) -> (i32, i32) {
    %c0_i32 = arith.constant 0 : i32
    %c0_i32_0 = arith.constant 0 : i32
    return %arg0, %c0_i32 : i32, i32
  }
}

</mosaic_0001>

<llo_original>
// kernel: tpu_custom_call.1
$region0: #{tpu_custom_call.1}
  #allocation0 [shape = 'u32[]', space=smem, size = 0x4, offset = 0x4, fixed_abs, tag = 'smem constant byte address 0x4 - core index']
  #allocation1 [shape = 'u32[144,128]{1,0:T(1,128)}', space=vmem, size = 0x12000, scoped, tag = 'internal scratch']
  %s0 = inlined_call_operand.hbm [shape: f32[2], index: 0, kind: input, shape index: {}]
  %s1 = inlined_call_operand.hbm [shape: f32[8,256], index: 1, kind: input, shape index: {}]
  %s2 = inlined_call_operand.vmem [shape: f32[8,1], index: 2, kind: output, shape index: {}]
  %s3 = sld [smem:[#allocation0]]
  $region26: #{tpu_custom_call.1} parent=0
    _
  %s5 = ssub.s32 1, %s3
  %s6 = scalar_select 0, %s5, %s3
  $region1: #{tpu_custom_call.1} parent=0
    #allocation2 [shape = 'u8[512]{0}', space=smem, size = 0x200, scoped, tag = 'input window, operand 0, single buffered']
    #allocation3 [shape = 's32[1]{0}', space=sflag, size = 0x4, scoped, tag = 'scoped memory for tpu_custom_call.1']
    #allocation4 [shape = 's32[1]{0}', space=sflag, size = 0x4, scoped, tag = 'scoped memory for tpu_custom_call.1']
    #allocation5 [shape = 'u8[8192]{0}', space=vmem, size = 0x2000, scoped, tag = 'input window, operand 1, single buffered']
    %7 = vsyncpa [#allocation4], 0
    %8 = vsyncpa [#allocation3], 0
    // Predicated region
    $region2: #{tpu_custom_call.1} parent=1 // pred_check
      _
    $region3: #{tpu_custom_call.1} parent=1 // pred_check_branch
      %10 = sbr.rel (0) target = $region5
    $region4: #{tpu_custom_call.1} parent=1 // pred_region
      %s12 = ssub.s32 16, 16
      %13 = vsyncadd [#allocation4], %s12
      %16 = dma.hbm_to_smem %s0, 16, [#allocation2], [#allocation4]
    $region5: #{tpu_custom_call.1} parent=1 // pred_fallthru
      _
    // Predicated region
    $region6: #{tpu_custom_call.1} parent=1 // pred_check
      _
    $region7: #{tpu_custom_call.1} parent=1 // pred_check_branch
      %18 = sbr.rel (0) target = $region9
    $region8: #{tpu_custom_call.1} parent=1 // pred_region
      %s20 = ssub.s32 256, 256
      %21 = vsyncadd [#allocation3], %s20
      %s23 = sshll.u32 [#allocation5], 4
      %s24 = int_to_ptr.vmem [resolvable:$true] %s23
      %26 = dma.hbm_to_vmem [thread:$0]  %s1, 256, %s24, [#allocation3]
    $region9: #{tpu_custom_call.1} parent=1 // pred_fallthru
      _
    // Predicated region
    $region10: #{tpu_custom_call.1} parent=1 // pred_check
      _
    $region11: #{tpu_custom_call.1} parent=1 // pred_check_branch
      %28 = sbr.rel (0) target = $region13
    $region12: #{tpu_custom_call.1} parent=1 // pred_region
      %29 = dma.done [#allocation4], 16
    $region13: #{tpu_custom_call.1} parent=1 // pred_fallthru
      _
    // Predicated region
    $region14: #{tpu_custom_call.1} parent=1 // pred_check
      _
    $region15: #{tpu_custom_call.1} parent=1 // pred_check_branch
      %31 = sbr.rel (0) target = $region17
    $region16: #{tpu_custom_call.1} parent=1 // pred_region
      %32 = dma.done [#allocation3], 256
    $region17: #{tpu_custom_call.1} parent=1 // pred_fallthru
      _
    %33 = sfence
    %s34 = sld [smem:[#allocation2 + $0x1]]
    %v35 = vld [vmem:[#allocation5] sm:$0xff]
    %v36 = vld [vmem:[#allocation5 + $0x8] sm:$0xff]
    %v37 = vmax.f32 %v35, 1e-06
    %v38 = vmax.f32 %v36, 1e-06
    %v39 = vmul.f32 %v37, %v37
    %v40 = vmul.f32 %v38, %v38
    %v41 = vmul.f32 %v37, %v39
    %v42 = vmul.f32 %v38, %v40
    %v43 = vadd.f32 %v41, %v42
    %44 = vadd.xlane.f32.xlu0 %v43
    %v45 = vpop.xlane.xlu0 %44
    %v46 = vmul.f32 %v45, 0.00390625
    %v47 = vlog2.pop %v46
    %v48 = vmul.f32 %v47, 0.6931472
    %v49 = vstv %s34
    %v50 = vmul.f32 %v48, %v49
    %v51 = vmul.f32 %v50, 1.442695
    %v52 = vpow.pop %v51
    %vm53 = vcmask 7168
    %54 = vst.msk [vmem:[%s2] sm:$0xff] %vm53, %v52
    // Predicated region
    $region18: #{tpu_custom_call.1} parent=1 // pred_check
      _
    $region19: #{tpu_custom_call.1} parent=1 // pred_check_branch
      %56 = sbr.rel (0) target = $region21
    $region20: #{tpu_custom_call.1} parent=1 // pred_region
      _
    $region21: #{tpu_custom_call.1} parent=1 // pred_fallthru
      _
    // Predicated region
    $region22: #{tpu_custom_call.1} parent=1 // pred_check
      _
    $region23: #{tpu_custom_call.1} parent=1 // pred_check_branch
      %58 = sbr.rel (0) target = $region25
    $region24: #{tpu_custom_call.1} parent=1 // pred_region
      _
    $region25: #{tpu_custom_call.1} parent=1 // pred_fallthru
      _
    %59 = vsyncpa [#allocation3], 1
    %60 = vsyncpa [#allocation4], 1

</llo_original>
